<compile_context>
chip_gen: v7x
topology: tpu7x:2x2x1
jax: 0.10.0
libtpu: 0.0.40
codegen_flags: <defaults>
</compile_context>

<pallas_src>
import jax
import jax.numpy as jnp
from jax import lax
from jax.experimental import pallas as pl
from jax.experimental.pallas import tpu as pltpu

BN_EPS = 1e-5


def meta_model_kernel(x_ref, p_ref, o_ref):
    """x_ref: (L, B) feature-major (batch on lanes).
    p_ref: (L, 4) packed params: [:,0]=gamma, [:,1]=beta, [:,2]=w, [:,3]=bias (replicated).
    o_ref: (1, B) lane-dense output row.
    """
    x = x_ref[...].astype(jnp.float32)            # (L, B)
    p = p_ref[...].astype(jnp.float32)            # (L, 4)

    gamma = p[:, 0:1]                             # (L, 1)
    beta = p[:, 1:2]                              # (L, 1)
    w = p[:, 2:3]                                 # (L, 1)
    bias = p[0:1, 3:4]                            # (1, 1)

    inv_b = jnp.float32(1.0 / x.shape[1])

    # ---- BatchNorm1d, training mode (biased batch variance), single pass ----
    s = jnp.sum(x, axis=1, keepdims=True)         # (L, 1)  lane reduce (XLU)
    ss = jnp.sum(x * x, axis=1, keepdims=True)    # (L, 1)
    mean = s * inv_b
    var = jnp.maximum(ss * inv_b - mean * mean, 0.0)

    # Fold inv_std*gamma and mean into one scale/shift: 1 mul + 1 add per elem.
    scale = gamma * lax.rsqrt(var + BN_EPS)       # (L, 1)
    shift = beta - mean * scale                   # (L, 1)

    # ---- BN affine + ReLU ----
    xn = jnp.maximum(x * scale + shift, 0.0)      # (L, B)

    # ---- Linear(L, 1) as broadcast-mul + sublane reduce (no MXU) ----
    out = jnp.sum(xn * w, axis=0, keepdims=True)  # (1, B)
    o_ref[...] = out + bias


def meta_model_forward(preds_tuple, gamma, beta, w, b):
    """preds_tuple: tuple of (B, 1) arrays (per-base-model predictions).
    gamma/beta: (1, L) BN affine params; w: (L, 1); b: (1, 1). Returns (B, 1)."""
    L = len(preds_tuple)
    B = preds_tuple[0].shape[0]

    # Contiguous stack to (L, B): each (B,1) pred reshapes (free) to a (1,B) row.
    x_lb = jnp.concatenate(
        [jnp.reshape(p, (1, B)) for p in preds_tuple], axis=0
    ).astype(jnp.float32)                                        # (L, B)

    # Pack all tiny parameters into a single (L, 4) array -> one DMA.
    params = jnp.concatenate(
        [
            jnp.reshape(gamma, (L, 1)),
            jnp.reshape(beta, (L, 1)),
            jnp.reshape(w, (L, 1)),
            jnp.broadcast_to(jnp.reshape(b, (1, 1)), (L, 1)),
        ],
        axis=1,
    ).astype(jnp.float32)                                        # (L, 4)

    out_1b = pl.pallas_call(
        meta_model_kernel,
        out_shape=jax.ShapeDtypeStruct((1, B), jnp.float32),
        grid_spec=pltpu.PrefetchScalarGridSpec(
            num_scalar_prefetch=0,
            grid=(1,),
            in_specs=[
                pl.BlockSpec((L, B), lambda i: (0, 0)),
                pl.BlockSpec((L, 4), lambda i: (0, 0)),
            ],
            out_specs=pl.BlockSpec((1, B), lambda i: (0, 0)),
        ),
        compiler_params=pltpu.CompilerParams(
            dimension_semantics=("arbitrary",)),
    )(x_lb, params)

    return jnp.reshape(out_1b, (B, 1))


if __name__ == "__main__":
    key = jax.random.PRNGKey(0)
    B = 128          # batch size (one full lane width -> lane-dense output)
    L = 4            # number of base models (self.len)

    # Deterministic synthetic per-model predictions: tuple of (B, 1) arrays.
    k_preds, k_w, k_b = jax.random.split(key, 3)
    pred_keys = jax.random.split(k_preds, L)
    preds = tuple(jax.random.normal(pk, (B, 1), dtype=jnp.float32)
                  for pk in pred_keys)

    # BatchNorm1d params: PyTorch default init gamma=1, beta=0.
    gamma = jnp.ones((1, L), dtype=jnp.float32)
    beta = jnp.zeros((1, L), dtype=jnp.float32)

    # Linear(L, 1) params: deterministic uniform(-1/sqrt(L), 1/sqrt(L)) like PyTorch.
    bound = 1.0 / jnp.sqrt(jnp.float32(L))
    w = jax.random.uniform(k_w, (L, 1), minval=-bound, maxval=bound,
                           dtype=jnp.float32)
    b = jax.random.uniform(k_b, (1, 1), minval=-bound, maxval=bound,
                           dtype=jnp.float32)

    out = meta_model_forward(preds, gamma, beta, w, b)
    out = jax.block_until_ready(out)

    # Pure-JAX reference check (original (B, L) semantics).
    x_ref = jnp.concatenate(preds, axis=1)                       # (B, L)
    mean = jnp.mean(x_ref, axis=0, keepdims=True)
    var = jnp.mean((x_ref - mean) ** 2, axis=0, keepdims=True)
    xn = (x_ref - mean) / jnp.sqrt(var + BN_EPS) * gamma + beta
    xn = jnp.maximum(xn, 0.0)
    ref = xn @ w + b
    assert out.shape == (B, 1)
    assert jnp.allclose(out, ref, atol=1e-4, rtol=1e-4)

    print("KERNEL_OK")
</pallas_src>

<mosaic_0001>
module attributes {stable_mosaic.version = 11 : i64} {
  func.func @meta_model_kernel(%arg0: i32, %arg1: memref<4x128xf32, #tpu.memory_space<vmem>>, %arg2: memref<4x4xf32, #tpu.memory_space<vmem>>, %arg3: memref<1x128xf32, #tpu.memory_space<vmem>>) attributes {dimension_semantics = [#tpu.dimension_semantics<arbitrary>], iteration_bounds = array<i64: 1>, scalar_prefetch = 0 : i64, scratch_operands = 0 : i64, tpu.core_type = #tpu.core_type<tc>, window_params = [{pipeline_mode = #tpu.pipeline_mode<synchronous>, transform_indices = @transform_0, window_bounds = array<i64: 4, 128>}, {pipeline_mode = #tpu.pipeline_mode<synchronous>, transform_indices = @transform_1, window_bounds = array<i64: 4, 4>}, {pipeline_mode = #tpu.pipeline_mode<synchronous>, transform_indices = @transform_2, window_bounds = array<i64: 1, 128>}]} {
    %c0 = arith.constant 0 : index
    %c0_0 = arith.constant 0 : index
    %0 = vector.load %arg1[%c0, %c0_0] : memref<4x128xf32, #tpu.memory_space<vmem>>, vector<4x128xf32>
    %c0_1 = arith.constant 0 : index
    %c0_2 = arith.constant 0 : index
    %1 = vector.load %arg2[%c0_1, %c0_2] : memref<4x4xf32, #tpu.memory_space<vmem>>, vector<4x4xf32>
    %2 = vector.extract_strided_slice %1 {offsets = [0, 0], sizes = [4, 1], strides = [1, 1]} : vector<4x4xf32> to vector<4x1xf32>
    %3 = vector.extract_strided_slice %1 {offsets = [0, 1], sizes = [4, 1], strides = [1, 1]} : vector<4x4xf32> to vector<4x1xf32>
    %4 = vector.extract_strided_slice %1 {offsets = [0, 2], sizes = [4, 1], strides = [1, 1]} : vector<4x4xf32> to vector<4x1xf32>
    %5 = vector.extract_strided_slice %1 {offsets = [0, 3], sizes = [1, 1], strides = [1, 1]} : vector<4x4xf32> to vector<1x1xf32>
    %cst = arith.constant dense<0.000000e+00> : vector<4xf32>
    %6 = vector.multi_reduction <add>, %0, %cst [1] : vector<4x128xf32> to vector<4xf32>
    %7 = vector.shape_cast %6 : vector<4xf32> to vector<4x1xf32>
    %8 = arith.mulf %0, %0 : vector<4x128xf32>
    %cst_3 = arith.constant dense<0.000000e+00> : vector<4xf32>
    %9 = vector.multi_reduction <add>, %8, %cst_3 [1] : vector<4x128xf32> to vector<4xf32>
    %10 = vector.shape_cast %9 : vector<4xf32> to vector<4x1xf32>
    %cst_4 = arith.constant 7.812500e-03 : f32
    %11 = vector.broadcast %cst_4 : f32 to vector<4x1xf32>
    %12 = arith.mulf %7, %11 : vector<4x1xf32>
    %cst_5 = arith.constant 7.812500e-03 : f32
    %13 = vector.broadcast %cst_5 : f32 to vector<4x1xf32>
    %14 = arith.mulf %10, %13 : vector<4x1xf32>
    %15 = arith.mulf %12, %12 : vector<4x1xf32>
    %16 = arith.subf %14, %15 : vector<4x1xf32>
    %cst_6 = arith.constant 0.000000e+00 : f32
    %17 = vector.broadcast %cst_6 : f32 to vector<4x1xf32>
    %18 = arith.maximumf %16, %17 : vector<4x1xf32>
    %cst_7 = arith.constant 9.99999974E-6 : f32
    %19 = vector.broadcast %cst_7 : f32 to vector<4x1xf32>
    %20 = arith.addf %18, %19 : vector<4x1xf32>
    %21 = math.rsqrt %20 : vector<4x1xf32>
    %22 = arith.mulf %2, %21 : vector<4x1xf32>
    %23 = arith.mulf %12, %22 : vector<4x1xf32>
    %24 = arith.subf %3, %23 : vector<4x1xf32>
    %25 = vector.broadcast %22 : vector<4x1xf32> to vector<4x128xf32>
    %26 = arith.mulf %0, %25 : vector<4x128xf32>
    %27 = vector.broadcast %24 : vector<4x1xf32> to vector<4x128xf32>
    %28 = arith.addf %26, %27 : vector<4x128xf32>
    %cst_8 = arith.constant 0.000000e+00 : f32
    %29 = vector.broadcast %cst_8 : f32 to vector<4x128xf32>
    %30 = arith.maximumf %28, %29 : vector<4x128xf32>
    %31 = vector.broadcast %4 : vector<4x1xf32> to vector<4x128xf32>
    %32 = arith.mulf %30, %31 : vector<4x128xf32>
    %cst_9 = arith.constant dense<0.000000e+00> : vector<128xf32>
    %33 = vector.multi_reduction <add>, %32, %cst_9 [0] : vector<4x128xf32> to vector<128xf32>
    %34 = vector.shape_cast %33 : vector<128xf32> to vector<1x128xf32>
    %35 = vector.broadcast %5 : vector<1x1xf32> to vector<1x128xf32>
    %36 = arith.addf %34, %35 : vector<1x128xf32>
    %c0_10 = arith.constant 0 : index
    %c0_11 = arith.constant 0 : index
    %37 = vector.load %arg3[%c0_10, %c0_11] : memref<1x128xf32, #tpu.memory_space<vmem>>, vector<1x128xf32>
    tpu.vector_store %arg3[%c0_10, %c0_11], %36 {strides = array<i32>} : memref<1x128xf32, #tpu.memory_space<vmem>>, vector<1x128xf32>,
    return
  }
  func.func @transform_0(%arg0: i32) -> (i32, i32) {
    %c0_i32 = arith.constant 0 : i32
    %c0_i32_0 = arith.constant 0 : i32
    %c0_i32_1 = arith.constant 0 : i32
    return %c0_i32, %c0_i32_0 : i32, i32
  }
  func.func @transform_1(%arg0: i32) -> (i32, i32) {
    %c0_i32 = arith.constant 0 : i32
    %c0_i32_0 = arith.constant 0 : i32
    %c0_i32_1 = arith.constant 0 : i32
    return %c0_i32, %c0_i32_0 : i32, i32
  }
  func.func @transform_2(%arg0: i32) -> (i32, i32) {
    %c0_i32 = arith.constant 0 : i32
    %c0_i32_0 = arith.constant 0 : i32
    %c0_i32_1 = arith.constant 0 : i32
    return %c0_i32, %c0_i32_0 : i32, i32
  }
}

</mosaic_0001>

<llo_original>
// kernel: tpu_custom_call.1
$region0: #{tpu_custom_call.1}
  #allocation0 [shape = 'u32[]', space=smem, size = 0x4, offset = 0x4, fixed_abs, tag = 'smem constant byte address 0x4 - core index']
  #allocation1 [shape = 'u32[144,128]{1,0:T(1,128)}', space=vmem, size = 0x12000, scoped, tag = 'internal scratch']
  %s0 = inlined_call_operand.hbm [shape: f32[4,128], index: 0, kind: input, shape index: {}]
  %s1 = inlined_call_operand.hbm [shape: f32[4,4], index: 1, kind: input, shape index: {}]
  %s2 = inlined_call_operand.hbm [shape: f32[1,128], index: 2, kind: output, shape index: {}]
  %s3 = sld [smem:[#allocation0]]
  $region26: #{tpu_custom_call.1} parent=0
    _
  %s5 = ssub.s32 1, %s3
  %s6 = scalar_select 0, %s5, %s3
  $region1: #{tpu_custom_call.1} parent=0
    #allocation2 [shape = 'u8[2048]{0}', space=vmem, size = 0x800, scoped, tag = 'input window, operand 0, single buffered']
    #allocation3 [shape = 's32[1]{0}', space=sflag, size = 0x4, scoped, tag = 'scoped memory for tpu_custom_call.1']
    #allocation4 [shape = 's32[1]{0}', space=sflag, size = 0x4, scoped, tag = 'scoped memory for tpu_custom_call.1']
    #allocation5 [shape = 'u8[2048]{0}', space=vmem, size = 0x800, scoped, tag = 'input window, operand 1, single buffered']
    #allocation6 [shape = 's32[1]{0}', space=sflag, size = 0x4, scoped, tag = 'scoped memory for tpu_custom_call.1']
    #allocation7 [shape = 'u8[512]{0}', space=vmem, size = 0x400, scoped, tag = 'output window, operand 0, single buffered']
    %7 = vsyncpa [#allocation3], 0
    %8 = vsyncpa [#allocation6], 0
    %9 = vsyncpa [#allocation4], 0
    // Predicated region
    $region2: #{tpu_custom_call.1} parent=1 // pred_check
      _
    $region3: #{tpu_custom_call.1} parent=1 // pred_check_branch
      %11 = sbr.rel (0) target = $region5
    $region4: #{tpu_custom_call.1} parent=1 // pred_region
      %s13 = ssub.s32 64, 64
      %14 = vsyncadd [#allocation3], %s13
      %s16 = sshll.u32 [#allocation2], 4
      %s17 = int_to_ptr.vmem [resolvable:$true] %s16
      %19 = dma.hbm_to_vmem [thread:$0]  %s0, 64, %s17, [#allocation3]
    $region5: #{tpu_custom_call.1} parent=1 // pred_fallthru
      _
    // Predicated region
    $region6: #{tpu_custom_call.1} parent=1 // pred_check
      _
    $region7: #{tpu_custom_call.1} parent=1 // pred_check_branch
      %21 = sbr.rel (0) target = $region9
    $region8: #{tpu_custom_call.1} parent=1 // pred_region
      %s23 = ssub.s32 64, 64
      %24 = vsyncadd [#allocation6], %s23
      %s26 = sshll.u32 [#allocation5], 4
      %s27 = int_to_ptr.vmem [resolvable:$true] %s26
      %29 = dma.hbm_to_vmem [thread:$0]  %s1, 64, %s27, [#allocation6]
    $region9: #{tpu_custom_call.1} parent=1 // pred_fallthru
      _
    // Predicated region
    $region10: #{tpu_custom_call.1} parent=1 // pred_check
      _
    $region11: #{tpu_custom_call.1} parent=1 // pred_check_branch
      %31 = sbr.rel (0) target = $region13
    $region12: #{tpu_custom_call.1} parent=1 // pred_region
      %32 = dma.done [#allocation3], 64
    $region13: #{tpu_custom_call.1} parent=1 // pred_fallthru
      _
    // Predicated region
    $region14: #{tpu_custom_call.1} parent=1 // pred_check
      _
    $region15: #{tpu_custom_call.1} parent=1 // pred_check_branch
      %34 = sbr.rel (0) target = $region17
    $region16: #{tpu_custom_call.1} parent=1 // pred_region
      %35 = dma.done [#allocation6], 64
    $region17: #{tpu_custom_call.1} parent=1 // pred_fallthru
      _
    %v36 = vld [vmem:[#allocation2] sm:$0xf]
    %v37 = vld [vmem:[#allocation5] sm:$0xf]
    %vm38 = vcmask 1043456
    %v39 = vsel %vm38, %v36, 0.0
    %40 = vadd.xlane.f32.xlu0 %v39
    %v41 = vpop.xlane.xlu0 %40
    %v42 = vmul.f32 %v36, %v36
    %v43 = vsel %vm38, %v42, 0.0
    %44 = vadd.xlane.f32.xlu0 %v43
    %v45 = vpop.xlane.xlu0 %44
    %v46 = vmul.f32 %v41, 0.0078125
    %v47 = vmul.f32 %v45, 0.0078125
    %v48 = vmul.f32 %v46, %v46
    %v49 = vsub.f32 %v47, %v48
    %v50 = vmax.f32 %v49, 0.0
    %v51 = vadd.f32 %v50, 1e-05
    %v52 = vrsqrt.pop %v51
    %v53 = vmul.f32 %v37, %v52
    %v54 = vmul.f32 %v46, %v53
    %56 = vrot.lane.b32.xlu0 %v54, 1
    %v57 = vpop.permute.xlu0 %56
    %v59 = vsub.f32 %v37, %v57
    %61 = vset.pattern.permute.xlu0 0
    %62 = vperm.xlu0 %61, %v53
    %v63 = vpop.permute.xlu0 %62
    %v65 = vmul.f32 %v36, %v63
    %67 = vset.pattern.permute.xlu0 1
    %68 = vperm.xlu0 %67, %v59
    %v69 = vpop.permute.xlu0 %68
    %v71 = vadd.f32 %v65, %v69
    %v72 = vmax.f32 %v71, 0.0
    %74 = vset.pattern.permute.xlu0 2
    %75 = vperm.xlu0 %74, %v37
    %v76 = vpop.permute.xlu0 %75
    %v78 = vmul.f32 %v72, %v76
    %v79 = vsel %vm38, %v78, 0.0
    %v80 = vrot.slane %v79, 4
    %v81 = vadd.f32 %v79, %v80
    %v82 = vrot.slane %v81, 2
    %v83 = vadd.f32 %v81, %v82
    %v84 = vrot.slane %v83, 1
    %v85 = vadd.f32 %v83, %v84
    %86 = vset.pattern.permute.xlu0 3
    %87 = vperm.xlu0 %86, %v37
    %v88 = vpop.permute.xlu0 %87
    %v90 = vadd.f32 %v85, %v88
    %91 = vst [vmem:[#allocation7] sm:$0x1] %v90
    // Predicated region
    $region18: #{tpu_custom_call.1} parent=1 // pred_check
      _
    $region19: #{tpu_custom_call.1} parent=1 // pred_check_branch
      %93 = sbr.rel (0) target = $region21
    $region20: #{tpu_custom_call.1} parent=1 // pred_region
      %s95 = ssub.s32 16, 16
      %96 = vsyncadd [#allocation4], %s95
      %s98 = sshll.u32 [#allocation7], 4
      %s99 = int_to_ptr.vmem [resolvable:$true] %s98
      %101 = dma.vmem_to_hbm [thread:$0]  %s99, 16, %s2, [#allocation4]
    $region21: #{tpu_custom_call.1} parent=1 // pred_fallthru
      _
    // Predicated region
    $region22: #{tpu_custom_call.1} parent=1 // pred_check
      _
    $region23: #{tpu_custom_call.1} parent=1 // pred_check_branch
      %103 = sbr.rel (0) target = $region25
    $region24: #{tpu_custom_call.1} parent=1 // pred_region
      %104 = dma.done [#allocation4], 16
    $region25: #{tpu_custom_call.1} parent=1 // pred_fallthru
      _
    %105 = vsyncpa [#allocation3], 1
    %106 = vsyncpa [#allocation6], 1
    %107 = vsyncpa [#allocation4], 1

</llo_original>
